<compile_context>
chip_gen: v7x
topology: tpu7x:2x2x1
jax: 0.10.0
libtpu: 0.0.40
codegen_flags: <defaults>
</compile_context>

<pallas_src>
import jax
import jax.numpy as jnp
from jax.experimental import pallas as pl
from jax.experimental.pallas import tpu as pltpu

# Model configuration (KeypointCNN1DSegment(num_classes, num_frames, motion_info=False))
NUM_CLASSES = 6
NUM_FRAMES = 16          # T
C_IN = 34                # motion_info=False -> 34 input channels
C1, C2, C3 = 32, 64, 128
BATCH = 4
EPS = 1e-5


def keypointcnn1d_segment_kernel(x_ref, mprev_ref, mnext_ref,
                                 w1_ref, t1_ref, w2_ref, t2_ref,
                                 w3_ref, t3_ref, w4_ref, b4_ref, out_ref):
    # x_ref: (B*T, 3*Cin) im2col of the padded input; all layers run with M = B*T.
    bt = x_ref.shape[0]
    c1 = w2_ref.shape[1]

    # conv1 (k=3, p=1) + folded BN1 + ReLU : one matmul
    h1 = jnp.maximum(
        jnp.dot(x_ref[...], w1_ref[...], preferred_element_type=jnp.float32)
        + t1_ref[...], 0.0)                                       # (B*T, C1)

    # conv2 (k=3, p=1): centre tap uses h1 directly; the +/-1 time shifts are
    # built in-register (zero row + static slice) and multiplied by 0/1 masks
    # that zero the first/last frame of every batch element.
    zrow = jnp.zeros((1, c1), jnp.float32)
    prev = jnp.concatenate([zrow, h1[:bt - 1, :]], axis=0) * mprev_ref[...]
    nxt = jnp.concatenate([h1[1:, :], zrow], axis=0) * mnext_ref[...]
    y2 = (jnp.dot(prev, w2_ref[0], preferred_element_type=jnp.float32)
          + jnp.dot(h1, w2_ref[1], preferred_element_type=jnp.float32)
          + jnp.dot(nxt, w2_ref[2], preferred_element_type=jnp.float32))
    h2 = jnp.maximum(y2 + t2_ref[...], 0.0)                       # (B*T, C2)

    # conv3 (1x1) + folded BN3 + ReLU : pointwise matmul
    h3 = jnp.maximum(
        jnp.dot(h2, w3_ref[...], preferred_element_type=jnp.float32)
        + t3_ref[...], 0.0)                                       # (B*T, C3)

    # conv4 (1x1): final logits per frame
    out_ref[...] = (jnp.dot(h3, w4_ref[...], preferred_element_type=jnp.float32)
                    + b4_ref[...])                                # (B*T, num_classes)


def keypointcnn1d_segment_forward(x, params):
    (W1, b1, g1, be1, m1, v1,
     W2, b2, g2, be2, m2, v2,
     W3, b3, g3, be3, m3, v3,
     W4, b4) = params
    B, Cin, T = x.shape
    num_classes = W4.shape[0]
    c1 = W2.shape[1]

    # --- layout plumbing + BN folding in plain JAX (outside the kernel) ---
    x_btc = jnp.transpose(x, (0, 2, 1))                           # (B, T, Cin)
    x_pad = jnp.pad(x_btc, ((0, 0), (1, 1), (0, 0)))              # (B, T+2, Cin)
    # im2col for conv1: column block k holds x_pad[:, t+k, :]
    x_im2col = jnp.concatenate([x_pad[:, k:k + T, :] for k in range(3)], axis=-1)
    x2d = x_im2col.reshape(B * T, 3 * Cin)                        # (B*T, 3*Cin)

    def bn_fold(gamma, beta, mean, var, bias):
        s = gamma / jnp.sqrt(var + EPS)
        return s, s * (bias - mean) + beta

    s1, t1 = bn_fold(g1, be1, m1, v1, b1)
    s2, t2 = bn_fold(g2, be2, m2, v2, b2)
    s3, t3 = bn_fold(g3, be3, m3, v3, b3)

    # conv1 weight (C1, Cin, 3) -> (3*Cin, C1), BN1 scale folded per out-channel
    w1 = jnp.transpose(W1, (2, 1, 0)).reshape(3 * Cin, -1) * s1[None, :]
    # conv2 weight (C2, C1, 3) -> (3, C1, C2), BN2 scale folded
    w2 = jnp.transpose(W2, (2, 1, 0)) * s2[None, None, :]
    # conv3 (1x1) weight (C3, C2, 1) -> (C2, C3), BN3 scale folded
    w3 = jnp.transpose(W3[:, :, 0], (1, 0)) * s3[None, :]
    # conv4 (1x1) weight (num_classes, C3, 1) -> (C3, num_classes)
    w4 = jnp.transpose(W4[:, :, 0], (1, 0))

    # 0/1 masks zeroing the shifted rows at per-batch time boundaries
    t_pos = jnp.tile(jnp.arange(T, dtype=jnp.int32), (B,))[:, None]     # (B*T, 1)
    mask_prev = jnp.broadcast_to((t_pos != 0).astype(jnp.float32), (B * T, c1))
    mask_next = jnp.broadcast_to((t_pos != T - 1).astype(jnp.float32), (B * T, c1))

    vmem = lambda: pl.BlockSpec(memory_space=pltpu.MemorySpace.VMEM)
    out2d = pl.pallas_call(
        keypointcnn1d_segment_kernel,
        out_shape=jax.ShapeDtypeStruct((B * T, num_classes), jnp.float32),
        in_specs=[vmem() for _ in range(11)],
        out_specs=vmem(),
    )(x2d, mask_prev, mask_next,
      w1, t1.reshape(1, -1), w2, t2.reshape(1, -1),
      w3, t3.reshape(1, -1), w4, b4.reshape(1, -1))

    # (B*T, num_classes) -> PyTorch NCL output (B, num_classes, T)
    return jnp.transpose(out2d.reshape(B, T, num_classes), (0, 2, 1))


def reference_forward(x, params):
    """Pure-JAX reference matching the PyTorch forward (eval-mode BatchNorm)."""
    (W1, b1, g1, be1, m1, v1,
     W2, b2, g2, be2, m2, v2,
     W3, b3, g3, be3, m3, v3,
     W4, b4) = params

    def conv1d(h, w, b, pad):
        y = jax.lax.conv_general_dilated(h, w, window_strides=(1,),
                                         padding=((pad, pad),),
                                         dimension_numbers=('NCH', 'OIH', 'NCH'))
        return y + b[None, :, None]

    def bn(h, g, be, m, v):
        return (g[None, :, None] * (h - m[None, :, None])
                / jnp.sqrt(v[None, :, None] + EPS) + be[None, :, None])

    h = jax.nn.relu(bn(conv1d(x, W1, b1, 1), g1, be1, m1, v1))
    h = jax.nn.relu(bn(conv1d(h, W2, b2, 1), g2, be2, m2, v2))
    h = jax.nn.relu(bn(conv1d(h, W3, b3, 0), g3, be3, m3, v3))
    return conv1d(h, W4, b4, 0)


if __name__ == "__main__":
    key = jax.random.PRNGKey(0)
    ks = jax.random.split(key, 21)

    def n(k, shape, scale=0.1):
        return scale * jax.random.normal(k, shape, jnp.float32)

    params = (
        # conv1: weight (32, 34, 3), bias (32,)
        n(ks[0], (C1, C_IN, 3)), n(ks[1], (C1,)),
        # bn1: gamma, beta, running_mean, running_var
        1.0 + n(ks[2], (C1,)), n(ks[3], (C1,)),
        n(ks[4], (C1,)), jax.random.uniform(ks[5], (C1,), jnp.float32, 0.5, 1.5),
        # conv2: weight (64, 32, 3), bias (64,)
        n(ks[6], (C2, C1, 3)), n(ks[7], (C2,)),
        # bn2
        1.0 + n(ks[8], (C2,)), n(ks[9], (C2,)),
        n(ks[10], (C2,)), jax.random.uniform(ks[11], (C2,), jnp.float32, 0.5, 1.5),
        # conv3 (1x1): weight (128, 64, 1), bias (128,)
        n(ks[12], (C3, C2, 1)), n(ks[13], (C3,)),
        # bn3
        1.0 + n(ks[14], (C3,)), n(ks[15], (C3,)),
        n(ks[16], (C3,)), jax.random.uniform(ks[17], (C3,), jnp.float32, 0.5, 1.5),
        # conv4 (1x1): weight (num_classes, 128, 1), bias (num_classes,)
        n(ks[18], (NUM_CLASSES, C3, 1)), n(ks[19], (NUM_CLASSES,)),
    )

    x = jax.random.normal(ks[20], (BATCH, C_IN, NUM_FRAMES), jnp.float32)  # PyTorch NCL

    out = keypointcnn1d_segment_forward(x, params)
    out = jax.block_until_ready(out)

    ref = reference_forward(x, params)
    assert out.shape == (BATCH, NUM_CLASSES, NUM_FRAMES)
    err = float(jnp.max(jnp.abs(out - ref)))
    assert jnp.allclose(out, ref, atol=1e-4, rtol=1e-4), err
    print("KERNEL_OK")
</pallas_src>

<mosaic_0001>
module attributes {stable_mosaic.version = 11 : i64} {
  func.func @keypointcnn1d_segment_kernel(%arg0: memref<64x102xf32, #tpu.memory_space<vmem>>, %arg1: memref<64x32xf32, #tpu.memory_space<vmem>>, %arg2: memref<64x32xf32, #tpu.memory_space<vmem>>, %arg3: memref<102x32xf32, #tpu.memory_space<vmem>>, %arg4: memref<1x32xf32, #tpu.memory_space<vmem>>, %arg5: memref<3x32x64xf32, #tpu.memory_space<vmem>>, %arg6: memref<1x64xf32, #tpu.memory_space<vmem>>, %arg7: memref<64x128xf32, #tpu.memory_space<vmem>>, %arg8: memref<1x128xf32, #tpu.memory_space<vmem>>, %arg9: memref<128x6xf32, #tpu.memory_space<vmem>>, %arg10: memref<1x6xf32, #tpu.memory_space<vmem>>, %arg11: memref<64x6xf32, #tpu.memory_space<vmem>>) attributes {dimension_semantics = [], scalar_prefetch = 0 : i64, scratch_operands = 0 : i64, tpu.core_type = #tpu.core_type<tc>} {
    %c0 = arith.constant 0 : index
    %c0_0 = arith.constant 0 : index
    %0 = vector.load %arg0[%c0, %c0_0] : memref<64x102xf32, #tpu.memory_space<vmem>>, vector<64x102xf32>
    %c0_1 = arith.constant 0 : index
    %c0_2 = arith.constant 0 : index
    %1 = vector.load %arg3[%c0_1, %c0_2] : memref<102x32xf32, #tpu.memory_space<vmem>>, vector<102x32xf32>
    %cst = arith.constant dense<0.000000e+00> : vector<64x32xf32>
    %2 = tpu.matmul %0, %1, %cst {dimension_numbers = #tpu.dot_dimension_numbers<[1], [0], [0], [1], [0, 0, 1, 1], [], []>} : vector<64x102xf32>, vector<102x32xf32>, vector<64x32xf32> -> vector<64x32xf32>
    %c0_3 = arith.constant 0 : index
    %c0_4 = arith.constant 0 : index
    %3 = vector.load %arg4[%c0_3, %c0_4] : memref<1x32xf32, #tpu.memory_space<vmem>>, vector<1x32xf32>
    %4 = vector.broadcast %3 : vector<1x32xf32> to vector<64x32xf32>
    %5 = arith.addf %2, %4 : vector<64x32xf32>
    %cst_5 = arith.constant 0.000000e+00 : f32
    %6 = vector.broadcast %cst_5 : f32 to vector<64x32xf32>
    %7 = arith.maximumf %5, %6 : vector<64x32xf32>
    %cst_6 = arith.constant 0.000000e+00 : f32
    %8 = vector.broadcast %cst_6 : f32 to vector<1x32xf32>
    %9 = vector.extract_strided_slice %7 {offsets = [0, 0], sizes = [63, 32], strides = [1, 1]} : vector<64x32xf32> to vector<63x32xf32>
    %10 = tpu.concatenate %8, %9 in 0 : vector<1x32xf32>, vector<63x32xf32> -> vector<64x32xf32>
    %c0_7 = arith.constant 0 : index
    %c0_8 = arith.constant 0 : index
    %11 = vector.load %arg1[%c0_7, %c0_8] : memref<64x32xf32, #tpu.memory_space<vmem>>, vector<64x32xf32>
    %12 = arith.mulf %10, %11 : vector<64x32xf32>
    %13 = vector.extract_strided_slice %7 {offsets = [1, 0], sizes = [63, 32], strides = [1, 1]} : vector<64x32xf32> to vector<63x32xf32>
    %14 = tpu.concatenate %13, %8 in 0 : vector<63x32xf32>, vector<1x32xf32> -> vector<64x32xf32>
    %c0_9 = arith.constant 0 : index
    %c0_10 = arith.constant 0 : index
    %15 = vector.load %arg2[%c0_9, %c0_10] : memref<64x32xf32, #tpu.memory_space<vmem>>, vector<64x32xf32>
    %16 = arith.mulf %14, %15 : vector<64x32xf32>
    %c0_11 = arith.constant 0 : index
    %c0_12 = arith.constant 0 : index
    %c0_13 = arith.constant 0 : index
    %17 = vector.load %arg5[%c0_11, %c0_12, %c0_13] : memref<3x32x64xf32, #tpu.memory_space<vmem>>, vector<1x32x64xf32>
    %18 = vector.shape_cast %17 : vector<1x32x64xf32> to vector<32x64xf32>
    %cst_14 = arith.constant dense<0.000000e+00> : vector<64x64xf32>
    %19 = tpu.matmul %12, %18, %cst_14 {dimension_numbers = #tpu.dot_dimension_numbers<[1], [0], [0], [1], [0, 0, 1, 1], [], []>} : vector<64x32xf32>, vector<32x64xf32>, vector<64x64xf32> -> vector<64x64xf32>
    %c1 = arith.constant 1 : index
    %c0_15 = arith.constant 0 : index
    %c0_16 = arith.constant 0 : index
    %20 = vector.load %arg5[%c1, %c0_15, %c0_16] : memref<3x32x64xf32, #tpu.memory_space<vmem>>, vector<1x32x64xf32>
    %21 = vector.shape_cast %20 : vector<1x32x64xf32> to vector<32x64xf32>
    %cst_17 = arith.constant dense<0.000000e+00> : vector<64x64xf32>
    %22 = tpu.matmul %7, %21, %cst_17 {dimension_numbers = #tpu.dot_dimension_numbers<[1], [0], [0], [1], [0, 0, 1, 1], [], []>} : vector<64x32xf32>, vector<32x64xf32>, vector<64x64xf32> -> vector<64x64xf32>
    %23 = arith.addf %19, %22 : vector<64x64xf32>
    %c2 = arith.constant 2 : index
    %c0_18 = arith.constant 0 : index
    %c0_19 = arith.constant 0 : index
    %24 = vector.load %arg5[%c2, %c0_18, %c0_19] : memref<3x32x64xf32, #tpu.memory_space<vmem>>, vector<1x32x64xf32>
    %25 = vector.shape_cast %24 : vector<1x32x64xf32> to vector<32x64xf32>
    %cst_20 = arith.constant dense<0.000000e+00> : vector<64x64xf32>
    %26 = tpu.matmul %16, %25, %cst_20 {dimension_numbers = #tpu.dot_dimension_numbers<[1], [0], [0], [1], [0, 0, 1, 1], [], []>} : vector<64x32xf32>, vector<32x64xf32>, vector<64x64xf32> -> vector<64x64xf32>
    %27 = arith.addf %23, %26 : vector<64x64xf32>
    %c0_21 = arith.constant 0 : index
    %c0_22 = arith.constant 0 : index
    %28 = vector.load %arg6[%c0_21, %c0_22] : memref<1x64xf32, #tpu.memory_space<vmem>>, vector<1x64xf32>
    %29 = vector.broadcast %28 : vector<1x64xf32> to vector<64x64xf32>
    %30 = arith.addf %27, %29 : vector<64x64xf32>
    %cst_23 = arith.constant 0.000000e+00 : f32
    %31 = vector.broadcast %cst_23 : f32 to vector<64x64xf32>
    %32 = arith.maximumf %30, %31 : vector<64x64xf32>
    %c0_24 = arith.constant 0 : index
    %c0_25 = arith.constant 0 : index
    %33 = vector.load %arg7[%c0_24, %c0_25] : memref<64x128xf32, #tpu.memory_space<vmem>>, vector<64x128xf32>
    %cst_26 = arith.constant dense<0.000000e+00> : vector<64x128xf32>
    %34 = tpu.matmul %32, %33, %cst_26 {dimension_numbers = #tpu.dot_dimension_numbers<[1], [0], [0], [1], [0, 0, 1, 1], [], []>} : vector<64x64xf32>, vector<64x128xf32>, vector<64x128xf32> -> vector<64x128xf32>
    %c0_27 = arith.constant 0 : index
    %c0_28 = arith.constant 0 : index
    %35 = vector.load %arg8[%c0_27, %c0_28] : memref<1x128xf32, #tpu.memory_space<vmem>>, vector<1x128xf32>
    %36 = vector.broadcast %35 : vector<1x128xf32> to vector<64x128xf32>
    %37 = arith.addf %34, %36 : vector<64x128xf32>
    %cst_29 = arith.constant 0.000000e+00 : f32
    %38 = vector.broadcast %cst_29 : f32 to vector<64x128xf32>
    %39 = arith.maximumf %37, %38 : vector<64x128xf32>
    %c0_30 = arith.constant 0 : index
    %c0_31 = arith.constant 0 : index
    %40 = vector.load %arg9[%c0_30, %c0_31] : memref<128x6xf32, #tpu.memory_space<vmem>>, vector<128x6xf32>
    %cst_32 = arith.constant dense<0.000000e+00> : vector<64x6xf32>
    %41 = tpu.matmul %39, %40, %cst_32 {dimension_numbers = #tpu.dot_dimension_numbers<[1], [0], [0], [1], [0, 0, 1, 1], [], []>} : vector<64x128xf32>, vector<128x6xf32>, vector<64x6xf32> -> vector<64x6xf32>
    %c0_33 = arith.constant 0 : index
    %c0_34 = arith.constant 0 : index
    %42 = vector.load %arg10[%c0_33, %c0_34] : memref<1x6xf32, #tpu.memory_space<vmem>>, vector<1x6xf32>
    %43 = vector.broadcast %42 : vector<1x6xf32> to vector<64x6xf32>
    %44 = arith.addf %41, %43 : vector<64x6xf32>
    %c0_35 = arith.constant 0 : index
    %c0_36 = arith.constant 0 : index
    %45 = vector.load %arg11[%c0_35, %c0_36] : memref<64x6xf32, #tpu.memory_space<vmem>>, vector<64x6xf32>
    tpu.vector_store %arg11[%c0_35, %c0_36], %44 {strides = array<i32>} : memref<64x6xf32, #tpu.memory_space<vmem>>, vector<64x6xf32>,
    return
  }
}

</mosaic_0001>

<llo_original>
// kernel: tpu_custom_call.1
$region0: #{tpu_custom_call.1}
  #allocation0 [shape = 'u32[]', space=smem, size = 0x4, offset = 0x4, fixed_abs, tag = 'smem constant byte address 0x4 - core index']
  #allocation1 [shape = 'u32[144,128]{1,0:T(1,128)}', space=vmem, size = 0x12000, scoped, tag = 'internal scratch']
  %s0 = inlined_call_operand.vmem [shape: f32[64,102], index: 0, kind: input, shape index: {}]
  %s1 = inlined_call_operand.vmem [shape: f32[64,32], index: 1, kind: input, shape index: {}]
  %s2 = inlined_call_operand.vmem [shape: f32[64,32], index: 2, kind: input, shape index: {}]
  %s3 = inlined_call_operand.vmem [shape: f32[102,32], index: 3, kind: input, shape index: {}]
  %s4 = inlined_call_operand.vmem [shape: f32[1,32], index: 4, kind: input, shape index: {}]
  %s5 = inlined_call_operand.vmem [shape: f32[3,32,64], index: 5, kind: input, shape index: {}]
  %s6 = inlined_call_operand.vmem [shape: f32[1,64], index: 6, kind: input, shape index: {}]
  %s7 = inlined_call_operand.vmem [shape: f32[64,128], index: 7, kind: input, shape index: {}]
  %s8 = inlined_call_operand.vmem [shape: f32[1,128], index: 8, kind: input, shape index: {}]
  %s9 = inlined_call_operand.vmem [shape: f32[128,6], index: 9, kind: input, shape index: {}]
  %s10 = inlined_call_operand.vmem [shape: f32[1,6], index: 10, kind: input, shape index: {}]
  %s11 = inlined_call_operand.vmem [shape: f32[64,6], index: 11, kind: output, shape index: {}]
  %s12 = sld [smem:[#allocation0]]
  $region54: #{tpu_custom_call.1} parent=0
    _
  %s14 = ssub.s32 1, %s12
  %s15 = scalar_select 0, %s14, %s12
  // Predicated region
  $region2: #{tpu_custom_call.1} parent=0 // pred_check
    _
  $region3: #{tpu_custom_call.1} parent=0 // pred_check_branch
    %17 = sbr.rel (0) target = $region5
  $region4: #{tpu_custom_call.1} parent=0 // pred_region
    _
  $region5: #{tpu_custom_call.1} parent=0 // pred_fallthru
    _
  // Predicated region
  $region6: #{tpu_custom_call.1} parent=0 // pred_check
    _
  $region7: #{tpu_custom_call.1} parent=0 // pred_check_branch
    %19 = sbr.rel (0) target = $region9
  $region8: #{tpu_custom_call.1} parent=0 // pred_region
    _
  $region9: #{tpu_custom_call.1} parent=0 // pred_fallthru
    _
  // Predicated region
  $region10: #{tpu_custom_call.1} parent=0 // pred_check
    _
  $region11: #{tpu_custom_call.1} parent=0 // pred_check_branch
    %21 = sbr.rel (0) target = $region13
  $region12: #{tpu_custom_call.1} parent=0 // pred_region
    _
  $region13: #{tpu_custom_call.1} parent=0 // pred_fallthru
    _
  // Predicated region
  $region14: #{tpu_custom_call.1} parent=0 // pred_check
    _
  $region15: #{tpu_custom_call.1} parent=0 // pred_check_branch
    %23 = sbr.rel (0) target = $region17
  $region16: #{tpu_custom_call.1} parent=0 // pred_region
    _
  $region17: #{tpu_custom_call.1} parent=0 // pred_fallthru
    _
  // Predicated region
  $region18: #{tpu_custom_call.1} parent=0 // pred_check
    _
  $region19: #{tpu_custom_call.1} parent=0 // pred_check_branch
    %25 = sbr.rel (0) target = $region21
  $region20: #{tpu_custom_call.1} parent=0 // pred_region
    _
  $region21: #{tpu_custom_call.1} parent=0 // pred_fallthru
    _
  // Predicated region
  $region22: #{tpu_custom_call.1} parent=0 // pred_check
    _
  $region23: #{tpu_custom_call.1} parent=0 // pred_check_branch
    %27 = sbr.rel (0) target = $region25
  $region24: #{tpu_custom_call.1} parent=0 // pred_region
    _
  $region25: #{tpu_custom_call.1} parent=0 // pred_fallthru
    _
  // Predicated region
  $region26: #{tpu_custom_call.1} parent=0 // pred_check
    _
  $region27: #{tpu_custom_call.1} parent=0 // pred_check_branch
    %29 = sbr.rel (0) target = $region29
  $region28: #{tpu_custom_call.1} parent=0 // pred_region
    _
  $region29: #{tpu_custom_call.1} parent=0 // pred_fallthru
    _
  // Predicated region
  $region30: #{tpu_custom_call.1} parent=0 // pred_check
    _
  $region31: #{tpu_custom_call.1} parent=0 // pred_check_branch
    %31 = sbr.rel (0) target = $region33
  $region32: #{tpu_custom_call.1} parent=0 // pred_region
    _
  $region33: #{tpu_custom_call.1} parent=0 // pred_fallthru
    _
  // Predicated region
  $region34: #{tpu_custom_call.1} parent=0 // pred_check
    _
  $region35: #{tpu_custom_call.1} parent=0 // pred_check_branch
    %33 = sbr.rel (0) target = $region37
  $region36: #{tpu_custom_call.1} parent=0 // pred_region
    _
  $region37: #{tpu_custom_call.1} parent=0 // pred_fallthru
    _
  // Predicated region
  $region38: #{tpu_custom_call.1} parent=0 // pred_check
    _
  $region39: #{tpu_custom_call.1} parent=0 // pred_check_branch
    %35 = sbr.rel (0) target = $region41
  $region40: #{tpu_custom_call.1} parent=0 // pred_region
    _
  $region41: #{tpu_custom_call.1} parent=0 // pred_fallthru
    _
  // Predicated region
  $region42: #{tpu_custom_call.1} parent=0 // pred_check
    _
  $region43: #{tpu_custom_call.1} parent=0 // pred_check_branch
    %37 = sbr.rel (0) target = $region45
  $region44: #{tpu_custom_call.1} parent=0 // pred_region
    _
  $region45: #{tpu_custom_call.1} parent=0 // pred_fallthru
    _
  %v38 = vld [vmem:[%s0] sm:$0xff]
  %v39 = vld [vmem:[%s0 + $0x8] sm:$0xff]
  %v40 = vld [vmem:[%s0 + $0x10] sm:$0xff]
  %v41 = vld [vmem:[%s0 + $0x18] sm:$0xff]
  %v42 = vld [vmem:[%s0 + $0x20] sm:$0xff]
  %v43 = vld [vmem:[%s0 + $0x28] sm:$0xff]
  %v44 = vld [vmem:[%s0 + $0x30] sm:$0xff]
  %v45 = vld [vmem:[%s0 + $0x38] sm:$0xff]
  %v46 = vld [vmem:[%s3] sm:$0xff]
  %v47 = vld [vmem:[%s3 + $0x8] sm:$0xff]
  %v48 = vld [vmem:[%s3 + $0x10] sm:$0xff]
  %v49 = vld [vmem:[%s3 + $0x18] sm:$0xff]
  %v50 = vld [vmem:[%s3 + $0x20] sm:$0xff]
  %v51 = vld [vmem:[%s3 + $0x28] sm:$0xff]
  %v52 = vld [vmem:[%s3 + $0x30] sm:$0xff]
  %v53 = vld [vmem:[%s3 + $0x38] sm:$0xff]
  %v54 = vld [vmem:[%s3 + $0x40] sm:$0xff]
  %v55 = vld [vmem:[%s3 + $0x48] sm:$0xff]
  %v56 = vld [vmem:[%s3 + $0x50] sm:$0xff]
  %v57 = vld [vmem:[%s3 + $0x58] sm:$0xff]
  %v58 = vld [vmem:[%s3 + $0x60] sm:$0x3f]
  %v59 = vld [vmem:[%s4] sm:$0x1]
  %v61 = vlaneseq
  %v62 = vshrl.u32 %v61, 7
  %v63 = vsub.s32 0, %v62
  %v64 = vrot.slane %v59, %v63
  %vm66 = vcmask 834560
  %v68 = vsel %vm66, %v38, 0
  %v71 = vsel %vm66, %v39, 0
  %v74 = vsel %vm66, %v40, 0
  %v77 = vsel %vm66, %v41, 0
  %v80 = vsel %vm66, %v42, 0
  %v83 = vsel %vm66, %v43, 0
  %v86 = vsel %vm66, %v44, 0
  %v89 = vsel %vm66, %v45, 0
  %vm91 = vcmask 1045504
  %v93 = vsel %vm91, %v58, 0
  %95 = vmatprep.subr.mxu0 0.0
  %96 = vmatpush1.msra.mxu0 %v46
  %97 = vmatprep.subr.mxu0 0.0
  %98 = vmatpush1.msra.mxu0 %v47
  %99 = vmatprep.subr.mxu0 0.0
  %100 = vmatpush1.msra.mxu0 %v48
  %101 = vmatprep.subr.mxu0 0.0
  %102 = vmatpush1.msra.mxu0 %v49
  %103 = vmatprep.subr.mxu0 0.0
  %104 = vmatpush1.msra.mxu0 %v50
  %105 = vmatprep.subr.mxu0 0.0
  %106 = vmatpush1.msra.mxu0 %v51
  %107 = vmatprep.subr.mxu0 0.0
  %108 = vmatpush1.msra.mxu0 %v52
  %109 = vmatprep.subr.mxu0 0.0
  %110 = vmatpush1.msra.mxu0 %v53
  %111 = vmatprep.subr.mxu0 0.0
  %112 = vmatpush1.msra.mxu0 %v54
  %113 = vmatprep.subr.mxu0 0.0
  %114 = vmatpush1.msra.mxu0 %v55
  %115 = vmatprep.subr.mxu0 0.0
  %116 = vmatpush1.msra.mxu0 %v56
  %117 = vmatprep.subr.mxu0 0.0
  %118 = vmatpush1.msra.mxu0 %v57
  %119 = vmatprep.subr.mxu0 0.0
  %120 = vmatpush1.msra.mxu0 %v93
  %121 = vmatprep.subr.mxu0 0.0
  %122 = vmatpush1.msra.mxu0 0.0
  %123 = vmatprep.subr.mxu0 0.0
  %124 = vmatpush1.msra.mxu0 0.0
  %125 = vmatprep.subr.mxu0 0.0
  %126 = vmatpush1.msra.mxu0 0.0
  %127 = vmatprep.subr.mxu0 0.0
  %128 = vmatpush1.msra.mxu0 0.0
  %129 = vmatprep.subr.mxu0 0.0
  %130 = vmatpush1.msra.mxu0 0.0
  %131 = vmatprep.subr.mxu0 0.0
  %132 = vmatpush1.msra.mxu0 0.0
  %133 = vmatprep.subr.mxu0 0.0
  %134 = vmatpush1.msra.mxu0 0.0
  %135 = vmatprep.subr.mxu0 0.0
  %136 = vmatpush1.msra.mxu0 0.0
  %137 = vmatprep.subr.mxu0 0.0
  %138 = vmatpush1.msra.mxu0 0.0
  %139 = vmatprep.subr.mxu0 0.0
  %140 = vmatpush1.msra.mxu0 0.0
  %141 = vmatprep.subr.mxu0 0.0
  %142 = vmatpush1.msra.mxu0 0.0
  %143 = vmatprep.subr.mxu0 0.0
  %144 = vmatpush1.msra.mxu0 0.0
  %145 = vmatprep.subr.mxu0 0.0
  %146 = vmatpush1.msra.mxu0 0.0
  %147 = vmatprep.subr.mxu0 0.0
  %148 = vmatpush1.msra.mxu0 0.0
  %149 = vmatprep.subr.mxu0 0.0
  %150 = vmatpush1.msra.mxu0 0.0
  %151 = vmatprep.subr.mxu0 0.0
  %152 = vmatpush1.msra.mxu0 0.0
  %153 = vmatprep.subr.mxu0 0.0
  %154 = vmatpush1.msra.mxu0 0.0
  %155 = vmatprep.subr.mxu0 0.0
  %156 = vmatpush1.msra.mxu0 0.0
  %157 = vmatprep.subr.mxu0 0.0
  %158 = vmatpush1.msra.mxu0 0.0
  %159 = vmatprep.mubr.f32.mxu0 0.0
  %160 = vmatmul.mubr.f32.gmra.mrb[0].mxu0 %v68
  %v161 = vpop.f32.mrb[0].mxu0
  %v162 = vadd.f32 %v64, %v161
  %v163 = vpop.f32.mrb[0].mxu0
  %164 = vmatprep.mubr.f32.mxu0 0.0
  %165 = vmatmul.mubr.f32.gmra.mrb[0].mxu0 %v71
  %v166 = vpop.f32.mrb[0].mxu0
  %v167 = vadd.f32 %v64, %v166
  %v168 = vpop.f32.mrb[0].mxu0
  %169 = vmatprep.mubr.f32.mxu0 0.0
  %170 = vmatmul.mubr.f32.gmra.mrb[0].mxu0 %v74
  %v171 = vpop.f32.mrb[0].mxu0
  %v172 = vadd.f32 %v64, %v171
  %v173 = vpop.f32.mrb[0].mxu0
  %174 = vmatprep.mubr.f32.mxu0 0.0
  %175 = vmatmul.mubr.f32.gmra.mrb[0].mxu0 %v77
  %v176 = vpop.f32.mrb[0].mxu0
  %v177 = vadd.f32 %v64, %v176
  %v178 = vpop.f32.mrb[0].mxu0
  %179 = vmatprep.mubr.f32.mxu0 0.0
  %180 = vmatmul.mubr.f32.gmra.mrb[0].mxu0 %v80
  %v181 = vpop.f32.mrb[0].mxu0
  %v182 = vadd.f32 %v64, %v181
  %v183 = vpop.f32.mrb[0].mxu0
  %184 = vmatprep.mubr.f32.mxu0 0.0
  %185 = vmatmul.mubr.f32.gmra.mrb[0].mxu0 %v83
  %v186 = vpop.f32.mrb[0].mxu0
  %v187 = vadd.f32 %v64, %v186
  %v188 = vpop.f32.mrb[0].mxu0
  %189 = vmatprep.mubr.f32.mxu0 0.0
  %190 = vmatmul.mubr.f32.gmra.mrb[0].mxu0 %v86
  %v191 = vpop.f32.mrb[0].mxu0
  %v192 = vadd.f32 %v64, %v191
  %v193 = vpop.f32.mrb[0].mxu0
  %194 = vmatprep.mubr.f32.mxu0 0.0
  %195 = vmatmul.mubr.f32.gmra.mrb[0].mxu0 %v89
  %v196 = vpop.f32.mrb[0].mxu0
  %v197 = vadd.f32 %v64, %v196
  %v198 = vpop.f32.mrb[0].mxu0
  %199 = vdwg.mxu0
  %v200 = vmax.f32 %v162, 0.0
  %v201 = vmax.f32 %v167, 0.0
  %v202 = vmax.f32 %v172, 0.0
  %v203 = vmax.f32 %v177, 0.0
  %v204 = vmax.f32 %v182, 0.0
  %v205 = vmax.f32 %v187, 0.0
  %v206 = vmax.f32 %v192, 0.0
  %v207 = vmax.f32 %v197, 0.0
  %vm216 = vcmask 1040384
  %v217 = vrot.slane %v200, 7
  %v218 = vrot.slane %v201, 7
  %v219 = vsel %vm216, %v217, %v218
  %v220 = vrot.slane %v202, 7
  %v221 = vsel %vm216, %v218, %v220
  %v222 = vrot.slane %v203, 7
  %v223 = vsel %vm216, %v220, %v222
  %v224 = vrot.slane %v204, 7
  %v225 = vsel %vm216, %v222, %v224
  %v226 = vrot.slane %v205, 7
  %v227 = vsel %vm216, %v224, %v226
  %v228 = vrot.slane %v206, 7
  %v229 = vsel %vm216, %v226, %v228
  %v230 = vrot.slane %v207, 7
  %v231 = vsel %vm216, %v228, %v230
  %v240 = vsel %vm216, 0.0, %v217
  %v241 = vld [vmem:[%s1] sm:$0xff]
  %v242 = vld [vmem:[%s1 + $0x8] sm:$0xff]
  %v243 = vld [vmem:[%s1 + $0x10] sm:$0xff]
  %v244 = vld [vmem:[%s1 + $0x18] sm:$0xff]
  %v245 = vld [vmem:[%s1 + $0x20] sm:$0xff]
  %v246 = vld [vmem:[%s1 + $0x28] sm:$0xff]
  %v247 = vld [vmem:[%s1 + $0x30] sm:$0xff]
  %v248 = vld [vmem:[%s1 + $0x38] sm:$0xff]
  %v249 = vmul.f32 %v240, %v241
  %v250 = vmul.f32 %v219, %v242
  %v251 = vmul.f32 %v221, %v243
  %v252 = vmul.f32 %v223, %v244
  %v253 = vmul.f32 %v225, %v245
  %v254 = vmul.f32 %v227, %v246
  %v255 = vmul.f32 %v229, %v247
  %v256 = vmul.f32 %v231, %v248
  %vm257 = vcmask 1046528
  %v258 = vrot.slane %v200, 1
  %v259 = vrot.slane %v201, 1
  %v260 = vsel %vm257, %v258, %v259
  %v261 = vrot.slane %v202, 1
  %v262 = vsel %vm257, %v259, %v261
  %v263 = vrot.slane %v203, 1
  %v264 = vsel %vm257, %v261, %v263
  %v265 = vrot.slane %v204, 1
  %v266 = vsel %vm257, %v263, %v265
  %v267 = vrot.slane %v205, 1
  %v268 = vsel %vm257, %v265, %v267
  %v269 = vrot.slane %v206, 1
  %v270 = vsel %vm257, %v267, %v269
  %v271 = vrot.slane %v207, 1
  %v272 = vsel %vm257, %v269, %v271
  %v281 = vsel %vm257, %v271, 0.0
  %v282 = vld [vmem:[%s2] sm:$0xff]
  %v283 = vld [vmem:[%s2 + $0x8] sm:$0xff]
  %v284 = vld [vmem:[%s2 + $0x10] sm:$0xff]
  %v285 = vld [vmem:[%s2 + $0x18] sm:$0xff]
  %v286 = vld [vmem:[%s2 + $0x20] sm:$0xff]
  %v287 = vld [vmem:[%s2 + $0x28] sm:$0xff]
  %v288 = vld [vmem:[%s2 + $0x30] sm:$0xff]
  %v289 = vld [vmem:[%s2 + $0x38] sm:$0xff]
  %v290 = vmul.f32 %v260, %v282
  %v291 = vmul.f32 %v262, %v283
  %v292 = vmul.f32 %v264, %v284
  %v293 = vmul.f32 %v266, %v285
  %v294 = vmul.f32 %v268, %v286
  %v295 = vmul.f32 %v270, %v287
  %v296 = vmul.f32 %v272, %v288
  %v297 = vmul.f32 %v281, %v289
  %v298 = vld [vmem:[%s5] sm:$0xff]
  %v299 = vld [vmem:[%s5 + $0x8] sm:$0xff]
  %v300 = vld [vmem:[%s5 + $0x10] sm:$0xff]
  %v301 = vld [vmem:[%s5 + $0x18] sm:$0xff]
  %s302 = scalar_lea.vmem %s5, 32
  %v303 = vld [vmem:[%s302] sm:$0xff]
  %v304 = vld [vmem:[%s302 + $0x8] sm:$0xff]
  %v305 = vld [vmem:[%s302 + $0x10] sm:$0xff]
  %v306 = vld [vmem:[%s302 + $0x18] sm:$0xff]
  %vm307 = vcmask 261120
  %v308 = vsel %vm307, %v200, 0
  %v310 = vsel %vm307, %v201, 0
  %v312 = vsel %vm307, %v202, 0
  %v314 = vsel %vm307, %v203, 0
  %v316 = vsel %vm307, %v204, 0
  %v318 = vsel %vm307, %v205, 0
  %v320 = vsel %vm307, %v206, 0
  %v322 = vsel %vm307, %v207, 0
  %324 = vmatprep.subr.mxu0 0.0
  %325 = vmatpush1.msra.mxu0 %v303
  %326 = vmatprep.subr.mxu0 0.0
  %327 = vmatpush1.msra.mxu0 %v304
  %328 = vmatprep.subr.mxu0 0.0
  %329 = vmatpush1.msra.mxu0 %v305
  %330 = vmatprep.subr.mxu0 0.0
  %331 = vmatpush1.msra.mxu0 %v306
  %332 = vmatprep.subr.mxu0 0.0
  %333 = vmatpush1.msra.mxu0 0.0
  %334 = vmatprep.subr.mxu0 0.0
  %335 = vmatpush1.msra.mxu0 0.0
  %336 = vmatprep.subr.mxu0 0.0
  %337 = vmatpush1.msra.mxu0 0.0
  %338 = vmatprep.subr.mxu0 0.0
  %339 = vmatpush1.msra.mxu0 0.0
  %340 = vmatprep.subr.mxu0 0.0
  %341 = vmatpush1.msra.mxu0 0.0
  %342 = vmatprep.subr.mxu0 0.0
  %343 = vmatpush1.msra.mxu0 0.0
  %344 = vmatprep.subr.mxu0 0.0
  %345 = vmatpush1.msra.mxu0 0.0
  %346 = vmatprep.subr.mxu0 0.0
  %347 = vmatpush1.msra.mxu0 0.0
  %348 = vmatprep.subr.mxu0 0.0
  %349 = vmatpush1.msra.mxu0 0.0
  %350 = vmatprep.subr.mxu0 0.0
  %351 = vmatpush1.msra.mxu0 0.0
  %352 = vmatprep.subr.mxu0 0.0
  %353 = vmatpush1.msra.mxu0 0.0
  %354 = vmatprep.subr.mxu0 0.0
  %355 = vmatpush1.msra.mxu0 0.0
  %356 = vmatprep.subr.mxu0 0.0
  %357 = vmatpush1.msra.mxu0 0.0
  %358 = vmatprep.subr.mxu0 0.0
  %359 = vmatpush1.msra.mxu0 0.0
  %360 = vmatprep.subr.mxu0 0.0
  %361 = vmatpush1.msra.mxu0 0.0
  %362 = vmatprep.subr.mxu0 0.0
  %363 = vmatpush1.msra.mxu0 0.0
  %364 = vmatprep.subr.mxu0 0.0
  %365 = vmatpush1.msra.mxu0 0.0
  %366 = vmatprep.subr.mxu0 0.0
  %367 = vmatpush1.msra.mxu0 0.0
  %368 = vmatprep.subr.mxu0 0.0
  %369 = vmatpush1.msra.mxu0 0.0
  %370 = vmatprep.subr.mxu0 0.0
  %371 = vmatpush1.msra.mxu0 0.0
  %372 = vmatprep.subr.mxu0 0.0
  %373 = vmatpush1.msra.mxu0 0.0
  %374 = vmatprep.subr.mxu0 0.0
  %375 = vmatpush1.msra.mxu0 0.0
  %376 = vmatprep.subr.mxu0 0.0
  %377 = vmatpush1.msra.mxu0 0.0
  %378 = vmatprep.subr.mxu0 0.0
  %379 = vmatpush1.msra.mxu0 0.0
  %380 = vmatprep.subr.mxu0 0.0
  %381 = vmatpush1.msra.mxu0 0.0
  %382 = vmatprep.subr.mxu0 0.0
  %383 = vmatpush1.msra.mxu0 0.0
  %384 = vmatprep.subr.mxu0 0.0
  %385 = vmatpush1.msra.mxu0 0.0
  %386 = vmatprep.subr.mxu0 0.0
  %387 = vmatpush1.msra.mxu0 0.0
  %388 = vmatprep.mubr.f32.mxu0 0.0
  %389 = vmatmul.mubr.f32.gmra.mrb[0].mxu0 %v308
  %v390 = vpop.f32.mrb[0].mxu0
  %v391 = vadd.f32 0.0, %v390
  %v392 = vpop.f32.mrb[0].mxu0
  %393 = vmatprep.mubr.f32.mxu0 0.0
  %394 = vmatmul.mubr.f32.gmra.mrb[0].mxu0 %v310
  %v395 = vpop.f32.mrb[0].mxu0
  %v396 = vadd.f32 0.0, %v395
  %v397 = vpop.f32.mrb[0].mxu0
  %398 = vmatprep.mubr.f32.mxu0 0.0
  %399 = vmatmul.mubr.f32.gmra.mrb[0].mxu0 %v312
  %v400 = vpop.f32.mrb[0].mxu0
  %v401 = vadd.f32 0.0, %v400
  %v402 = vpop.f32.mrb[0].mxu0
  %403 = vmatprep.mubr.f32.mxu0 0.0
  %404 = vmatmul.mubr.f32.gmra.mrb[0].mxu0 %v314
  %v405 = vpop.f32.mrb[0].mxu0
  %v406 = vadd.f32 0.0, %v405
  %v407 = vpop.f32.mrb[0].mxu0
  %408 = vmatprep.mubr.f32.mxu0 0.0
  %409 = vmatmul.mubr.f32.gmra.mrb[0].mxu0 %v316
  %v410 = vpop.f32.mrb[0].mxu0
  %v411 = vadd.f32 0.0, %v410
  %v412 = vpop.f32.mrb[0].mxu0
  %413 = vmatprep.mubr.f32.mxu0 0.0
  %414 = vmatmul.mubr.f32.gmra.mrb[0].mxu0 %v318
  %v415 = vpop.f32.mrb[0].mxu0
  %v416 = vadd.f32 0.0, %v415
  %v417 = vpop.f32.mrb[0].mxu0
  %418 = vmatprep.mubr.f32.mxu0 0.0
  %419 = vmatmul.mubr.f32.gmra.mrb[0].mxu0 %v320
  %v420 = vpop.f32.mrb[0].mxu0
  %v421 = vadd.f32 0.0, %v420
  %v422 = vpop.f32.mrb[0].mxu0
  %423 = vmatprep.mubr.f32.mxu0 0.0
  %424 = vmatmul.mubr.f32.gmra.mrb[0].mxu0 %v322
  %v425 = vpop.f32.mrb[0].mxu0
  %v426 = vadd.f32 0.0, %v425
  %v427 = vpop.f32.mrb[0].mxu0
  %428 = vdwg.mxu0
  %v430 = vsel %vm307, %v249, 0
  %v433 = vsel %vm307, %v250, 0
  %v436 = vsel %vm307, %v251, 0
  %v439 = vsel %vm307, %v252, 0
  %v442 = vsel %vm307, %v253, 0
  %v445 = vsel %vm307, %v254, 0
  %v448 = vsel %vm307, %v255, 0
  %v451 = vsel %vm307, %v256, 0
  %453 = vmatprep.subr.mxu0 0.0
  %454 = vmatpush1.msra.mxu0 %v298
  %455 = vmatprep.subr.mxu0 0.0
  %456 = vmatpush1.msra.mxu0 %v299
  %457 = vmatprep.subr.mxu0 0.0
  %458 = vmatpush1.msra.mxu0 %v300
  %459 = vmatprep.subr.mxu0 0.0
  %460 = vmatpush1.msra.mxu0 %v301
  %461 = vmatprep.subr.mxu0 0.0
  %462 = vmatpush1.msra.mxu0 0.0
  %463 = vmatprep.subr.mxu0 0.0
  %464 = vmatpush1.msra.mxu0 0.0
  %465 = vmatprep.subr.mxu0 0.0
  %466 = vmatpush1.msra.mxu0 0.0
  %467 = vmatprep.subr.mxu0 0.0
  %468 = vmatpush1.msra.mxu0 0.0
  %469 = vmatprep.subr.mxu0 0.0
  %470 = vmatpush1.msra.mxu0 0.0
  %471 = vmatprep.subr.mxu0 0.0
  %472 = vmatpush1.msra.mxu0 0.0
  %473 = vmatprep.subr.mxu0 0.0
  %474 = vmatpush1.msra.mxu0 0.0
  %475 = vmatprep.subr.mxu0 0.0
  %476 = vmatpush1.msra.mxu0 0.0
  %477 = vmatprep.subr.mxu0 0.0
  %478 = vmatpush1.msra.mxu0 0.0
  %479 = vmatprep.subr.mxu0 0.0
  %480 = vmatpush1.msra.mxu0 0.0
  %481 = vmatprep.subr.mxu0 0.0
  %482 = vmatpush1.msra.mxu0 0.0
  %483 = vmatprep.subr.mxu0 0.0
  %484 = vmatpush1.msra.mxu0 0.0
  %485 = vmatprep.subr.mxu0 0.0
  %486 = vmatpush1.msra.mxu0 0.0
  %487 = vmatprep.subr.mxu0 0.0
  %488 = vmatpush1.msra.mxu0 0.0
  %489 = vmatprep.subr.mxu0 0.0
  %490 = vmatpush1.msra.mxu0 0.0
  %491 = vmatprep.subr.mxu0 0.0
  %492 = vmatpush1.msra.mxu0 0.0
  %493 = vmatprep.subr.mxu0 0.0
  %494 = vmatpush1.msra.mxu0 0.0
  %495 = vmatprep.subr.mxu0 0.0
  %496 = vmatpush1.msra.mxu0 0.0
  %497 = vmatprep.subr.mxu0 0.0
  %498 = vmatpush1.msra.mxu0 0.0
  %499 = vmatprep.subr.mxu0 0.0
  %500 = vmatpush1.msra.mxu0 0.0
  %501 = vmatprep.subr.mxu0 0.0
  %502 = vmatpush1.msra.mxu0 0.0
  %503 = vmatprep.subr.mxu0 0.0
  %504 = vmatpush1.msra.mxu0 0.0
  %505 = vmatprep.subr.mxu0 0.0
  %506 = vmatpush1.msra.mxu0 0.0
  %507 = vmatprep.subr.mxu0 0.0
  %508 = vmatpush1.msra.mxu0 0.0
  %509 = vmatprep.subr.mxu0 0.0
  %510 = vmatpush1.msra.mxu0 0.0
  %511 = vmatprep.subr.mxu0 0.0
  %512 = vmatpush1.msra.mxu0 0.0
  %513 = vmatprep.subr.mxu0 0.0
  %514 = vmatpush1.msra.mxu0 0.0
  %515 = vmatprep.subr.mxu0 0.0
  %516 = vmatpush1.msra.mxu0 0.0
  %517 = vmatprep.mubr.f32.mxu0 0.0
  %518 = vmatmul.mubr.f32.gmra.mrb[0].mxu0 %v430
  %v519 = vpop.f32.mrb[0].mxu0
  %v520 = vadd.f32 %v391, %v519
  %v521 = vpop.f32.mrb[0].mxu0
  %522 = vmatprep.mubr.f32.mxu0 0.0
  %523 = vmatmul.mubr.f32.gmra.mrb[0].mxu0 %v433
  %v524 = vpop.f32.mrb[0].mxu0
  %v525 = vadd.f32 %v396, %v524
  %v526 = vpop.f32.mrb[0].mxu0
  %527 = vmatprep.mubr.f32.mxu0 0.0
  %528 = vmatmul.mubr.f32.gmra.mrb[0].mxu0 %v436
  %v529 = vpop.f32.mrb[0].mxu0
  %v530 = vadd.f32 %v401, %v529
  %v531 = vpop.f32.mrb[0].mxu0
  %532 = vmatprep.mubr.f32.mxu0 0.0
  %533 = vmatmul.mubr.f32.gmra.mrb[0].mxu0 %v439
  %v534 = vpop.f32.mrb[0].mxu0
  %v535 = vadd.f32 %v406, %v534
  %v536 = vpop.f32.mrb[0].mxu0
  %537 = vmatprep.mubr.f32.mxu0 0.0
  %538 = vmatmul.mubr.f32.gmra.mrb[0].mxu0 %v442
  %v539 = vpop.f32.mrb[0].mxu0
  %v540 = vadd.f32 %v411, %v539
  %v541 = vpop.f32.mrb[0].mxu0
  %542 = vmatprep.mubr.f32.mxu0 0.0
  %543 = vmatmul.mubr.f32.gmra.mrb[0].mxu0 %v445
  %v544 = vpop.f32.mrb[0].mxu0
  %v545 = vadd.f32 %v416, %v544
  %v546 = vpop.f32.mrb[0].mxu0
  %547 = vmatprep.mubr.f32.mxu0 0.0
  %548 = vmatmul.mubr.f32.gmra.mrb[0].mxu0 %v448
  %v549 = vpop.f32.mrb[0].mxu0
  %v550 = vadd.f32 %v421, %v549
  %v551 = vpop.f32.mrb[0].mxu0
  %552 = vmatprep.mubr.f32.mxu0 0.0
  %553 = vmatmul.mubr.f32.gmra.mrb[0].mxu0 %v451
  %v554 = vpop.f32.mrb[0].mxu0
  %v555 = vadd.f32 %v426, %v554
  %v556 = vpop.f32.mrb[0].mxu0
  %557 = vdwg.mxu0
  %s558 = scalar_lea.vmem %s5, 64
  %v559 = vld [vmem:[%s558] sm:$0xff]
  %v560 = vld [vmem:[%s558 + $0x8] sm:$0xff]
  %v561 = vld [vmem:[%s558 + $0x10] sm:$0xff]
  %v562 = vld [vmem:[%s558 + $0x18] sm:$0xff]
  %v564 = vsel %vm307, %v290, 0
  %v567 = vsel %vm307, %v291, 0
  %v570 = vsel %vm307, %v292, 0
  %v573 = vsel %vm307, %v293, 0
  %v576 = vsel %vm307, %v294, 0
  %v579 = vsel %vm307, %v295, 0
  %v582 = vsel %vm307, %v296, 0
  %v585 = vsel %vm307, %v297, 0
  %587 = vmatprep.subr.mxu0 0.0
  %588 = vmatpush1.msra.mxu0 %v559
  %589 = vmatprep.subr.mxu0 0.0
  %590 = vmatpush1.msra.mxu0 %v560
  %591 = vmatprep.subr.mxu0 0.0
  %592 = vmatpush1.msra.mxu0 %v561
  %593 = vmatprep.subr.mxu0 0.0
  %594 = vmatpush1.msra.mxu0 %v562
  %595 = vmatprep.subr.mxu0 0.0
  %596 = vmatpush1.msra.mxu0 0.0
  %597 = vmatprep.subr.mxu0 0.0
  %598 = vmatpush1.msra.mxu0 0.0
  %599 = vmatprep.subr.mxu0 0.0
  %600 = vmatpush1.msra.mxu0 0.0
  %601 = vmatprep.subr.mxu0 0.0
  %602 = vmatpush1.msra.mxu0 0.0
  %603 = vmatprep.subr.mxu0 0.0
  %604 = vmatpush1.msra.mxu0 0.0
  %605 = vmatprep.subr.mxu0 0.0
  %606 = vmatpush1.msra.mxu0 0.0
  %607 = vmatprep.subr.mxu0 0.0
  %608 = vmatpush1.msra.mxu0 0.0
  %609 = vmatprep.subr.mxu0 0.0
  %610 = vmatpush1.msra.mxu0 0.0
  %611 = vmatprep.subr.mxu0 0.0
  %612 = vmatpush1.msra.mxu0 0.0
  %613 = vmatprep.subr.mxu0 0.0
  %614 = vmatpush1.msra.mxu0 0.0
  %615 = vmatprep.subr.mxu0 0.0
  %616 = vmatpush1.msra.mxu0 0.0
  %617 = vmatprep.subr.mxu0 0.0
  %618 = vmatpush1.msra.mxu0 0.0
  %619 = vmatprep.subr.mxu0 0.0
  %620 = vmatpush1.msra.mxu0 0.0
  %621 = vmatprep.subr.mxu0 0.0
  %622 = vmatpush1.msra.mxu0 0.0
  %623 = vmatprep.subr.mxu0 0.0
  %624 = vmatpush1.msra.mxu0 0.0
  %625 = vmatprep.subr.mxu0 0.0
  %626 = vmatpush1.msra.mxu0 0.0
  %627 = vmatprep.subr.mxu0 0.0
  %628 = vmatpush1.msra.mxu0 0.0
  %629 = vmatprep.subr.mxu0 0.0
  %630 = vmatpush1.msra.mxu0 0.0
  %631 = vmatprep.subr.mxu0 0.0
  %632 = vmatpush1.msra.mxu0 0.0
  %633 = vmatprep.subr.mxu0 0.0
  %634 = vmatpush1.msra.mxu0 0.0
  %635 = vmatprep.subr.mxu0 0.0
  %636 = vmatpush1.msra.mxu0 0.0
  %637 = vmatprep.subr.mxu0 0.0
  %638 = vmatpush1.msra.mxu0 0.0
  %639 = vmatprep.subr.mxu0 0.0
  %640 = vmatpush1.msra.mxu0 0.0
  %641 = vmatprep.subr.mxu0 0.0
  %642 = vmatpush1.msra.mxu0 0.0
  %643 = vmatprep.subr.mxu0 0.0
  %644 = vmatpush1.msra.mxu0 0.0
  %645 = vmatprep.subr.mxu0 0.0
  %646 = vmatpush1.msra.mxu0 0.0
  %647 = vmatprep.subr.mxu0 0.0
  %648 = vmatpush1.msra.mxu0 0.0
  %649 = vmatprep.subr.mxu0 0.0
  %650 = vmatpush1.msra.mxu0 0.0
  %651 = vmatprep.mubr.f32.mxu0 0.0
  %652 = vmatmul.mubr.f32.gmra.mrb[0].mxu0 %v564
  %v653 = vpop.f32.mrb[0].mxu0
  %v654 = vadd.f32 0.0, %v653
  %v655 = vpop.f32.mrb[0].mxu0
  %656 = vmatprep.mubr.f32.mxu0 0.0
  %657 = vmatmul.mubr.f32.gmra.mrb[0].mxu0 %v567
  %v658 = vpop.f32.mrb[0].mxu0
  %v659 = vadd.f32 0.0, %v658
  %v660 = vpop.f32.mrb[0].mxu0
  %661 = vmatprep.mubr.f32.mxu0 0.0
  %662 = vmatmul.mubr.f32.gmra.mrb[0].mxu0 %v570
  %v663 = vpop.f32.mrb[0].mxu0
  %v664 = vadd.f32 0.0, %v663
  %v665 = vpop.f32.mrb[0].mxu0
  %666 = vmatprep.mubr.f32.mxu0 0.0
  %667 = vmatmul.mubr.f32.gmra.mrb[0].mxu0 %v573
  %v668 = vpop.f32.mrb[0].mxu0
  %v669 = vadd.f32 0.0, %v668
  %v670 = vpop.f32.mrb[0].mxu0
  %671 = vmatprep.mubr.f32.mxu0 0.0
  %672 = vmatmul.mubr.f32.gmra.mrb[0].mxu0 %v576
  %v673 = vpop.f32.mrb[0].mxu0
  %v674 = vadd.f32 0.0, %v673
  %v675 = vpop.f32.mrb[0].mxu0
  %676 = vmatprep.mubr.f32.mxu0 0.0
  %677 = vmatmul.mubr.f32.gmra.mrb[0].mxu0 %v579
  %v678 = vpop.f32.mrb[0].mxu0
  %v679 = vadd.f32 0.0, %v678
  %v680 = vpop.f32.mrb[0].mxu0
  %681 = vmatprep.mubr.f32.mxu0 0.0
  %682 = vmatmul.mubr.f32.gmra.mrb[0].mxu0 %v582
  %v683 = vpop.f32.mrb[0].mxu0
  %v684 = vadd.f32 0.0, %v683
  %v685 = vpop.f32.mrb[0].mxu0
  %686 = vmatprep.mubr.f32.mxu0 0.0
  %687 = vmatmul.mubr.f32.gmra.mrb[0].mxu0 %v585
  %v688 = vpop.f32.mrb[0].mxu0
  %v689 = vadd.f32 0.0, %v688
  %v690 = vpop.f32.mrb[0].mxu0
  %691 = vdwg.mxu0
  %v692 = vadd.f32 %v520, %v654
  %v693 = vadd.f32 %v525, %v659
  %v694 = vadd.f32 %v530, %v664
  %v695 = vadd.f32 %v535, %v669
  %v696 = vadd.f32 %v540, %v674
  %v697 = vadd.f32 %v545, %v679
  %v698 = vadd.f32 %v550, %v684
  %v699 = vadd.f32 %v555, %v689
  %v700 = vld [vmem:[%s6] sm:$0x1]
  %v702 = vlaneseq
  %v703 = vshrl.u32 %v702, 7
  %v704 = vsub.s32 0, %v703
  %v705 = vrot.slane %v700, %v704
  %v707 = vadd.f32 %v692, %v705
  %v708 = vadd.f32 %v693, %v705
  %v709 = vadd.f32 %v694, %v705
  %v710 = vadd.f32 %v695, %v705
  %v711 = vadd.f32 %v696, %v705
  %v712 = vadd.f32 %v697, %v705
  %v713 = vadd.f32 %v698, %v705
  %v714 = vadd.f32 %v699, %v705
  %v715 = vmax.f32 %v707, 0.0
  %v716 = vmax.f32 %v708, 0.0
  %v717 = vmax.f32 %v709, 0.0
  %v718 = vmax.f32 %v710, 0.0
  %v719 = vmax.f32 %v711, 0.0
  %v720 = vmax.f32 %v712, 0.0
  %v721 = vmax.f32 %v713, 0.0
  %v722 = vmax.f32 %v714, 0.0
  %v723 = vld [vmem:[%s7] sm:$0xff]
  %v724 = vld [vmem:[%s7 + $0x8] sm:$0xff]
  %v725 = vld [vmem:[%s7 + $0x10] sm:$0xff]
  %v726 = vld [vmem:[%s7 + $0x18] sm:$0xff]
  %v727 = vld [vmem:[%s7 + $0x20] sm:$0xff]
  %v728 = vld [vmem:[%s7 + $0x28] sm:$0xff]
  %v729 = vld [vmem:[%s7 + $0x30] sm:$0xff]
  %v730 = vld [vmem:[%s7 + $0x38] sm:$0xff]
  %v731 = vld [vmem:[%s8] sm:$0x1]
  %v733 = vlaneseq
  %v734 = vshrl.u32 %v733, 7
  %v735 = vsub.s32 0, %v734
  %v736 = vrot.slane %v731, %v735
  %vm738 = vcmask 523264
  %v740 = vsel %vm738, %v715, 0
  %v743 = vsel %vm738, %v716, 0
  %v746 = vsel %vm738, %v717, 0
  %v749 = vsel %vm738, %v718, 0
  %v752 = vsel %vm738, %v719, 0
  %v755 = vsel %vm738, %v720, 0
  %v758 = vsel %vm738, %v721, 0
  %v761 = vsel %vm738, %v722, 0
  %763 = vmatprep.subr.mxu0 0.0
  %764 = vmatpush1.msra.mxu0 %v723
  %765 = vmatprep.subr.mxu0 0.0
  %766 = vmatpush1.msra.mxu0 %v724
  %767 = vmatprep.subr.mxu0 0.0
  %768 = vmatpush1.msra.mxu0 %v725
  %769 = vmatprep.subr.mxu0 0.0
  %770 = vmatpush1.msra.mxu0 %v726
  %771 = vmatprep.subr.mxu0 0.0
  %772 = vmatpush1.msra.mxu0 %v727
  %773 = vmatprep.subr.mxu0 0.0
  %774 = vmatpush1.msra.mxu0 %v728
  %775 = vmatprep.subr.mxu0 0.0
  %776 = vmatpush1.msra.mxu0 %v729
  %777 = vmatprep.subr.mxu0 0.0
  %778 = vmatpush1.msra.mxu0 %v730
  %779 = vmatprep.subr.mxu0 0.0
  %780 = vmatpush1.msra.mxu0 0.0
  %781 = vmatprep.subr.mxu0 0.0
  %782 = vmatpush1.msra.mxu0 0.0
  %783 = vmatprep.subr.mxu0 0.0
  %784 = vmatpush1.msra.mxu0 0.0
  %785 = vmatprep.subr.mxu0 0.0
  %786 = vmatpush1.msra.mxu0 0.0
  %787 = vmatprep.subr.mxu0 0.0
  %788 = vmatpush1.msra.mxu0 0.0
  %789 = vmatprep.subr.mxu0 0.0
  %790 = vmatpush1.msra.mxu0 0.0
  %791 = vmatprep.subr.mxu0 0.0
  %792 = vmatpush1.msra.mxu0 0.0
  %793 = vmatprep.subr.mxu0 0.0
  %794 = vmatpush1.msra.mxu0 0.0
  %795 = vmatprep.subr.mxu0 0.0
  %796 = vmatpush1.msra.mxu0 0.0
  %797 = vmatprep.subr.mxu0 0.0
  %798 = vmatpush1.msra.mxu0 0.0
  %799 = vmatprep.subr.mxu0 0.0
  %800 = vmatpush1.msra.mxu0 0.0
  %801 = vmatprep.subr.mxu0 0.0
  %802 = vmatpush1.msra.mxu0 0.0
  %803 = vmatprep.subr.mxu0 0.0
  %804 = vmatpush1.msra.mxu0 0.0
  %805 = vmatprep.subr.mxu0 0.0
  %806 = vmatpush1.msra.mxu0 0.0
  %807 = vmatprep.subr.mxu0 0.0
  %808 = vmatpush1.msra.mxu0 0.0
  %809 = vmatprep.subr.mxu0 0.0
  %810 = vmatpush1.msra.mxu0 0.0
  %811 = vmatprep.subr.mxu0 0.0
  %812 = vmatpush1.msra.mxu0 0.0
  %813 = vmatprep.subr.mxu0 0.0
  %814 = vmatpush1.msra.mxu0 0.0
  %815 = vmatprep.subr.mxu0 0.0
  %816 = vmatpush1.msra.mxu0 0.0
  %817 = vmatprep.subr.mxu0 0.0
  %818 = vmatpush1.msra.mxu0 0.0
  %819 = vmatprep.subr.mxu0 0.0
  %820 = vmatpush1.msra.mxu0 0.0
  %821 = vmatprep.subr.mxu0 0.0
  %822 = vmatpush1.msra.mxu0 0.0
  %823 = vmatprep.subr.mxu0 0.0
  %824 = vmatpush1.msra.mxu0 0.0
  %825 = vmatprep.subr.mxu0 0.0
  %826 = vmatpush1.msra.mxu0 0.0
  %827 = vmatprep.mubr.f32.mxu0 0.0
  %828 = vmatmul.mubr.f32.gmra.mrb[0].mxu0 %v740
  %v829 = vpop.f32.mrb[0].mxu0
  %v830 = vadd.f32 %v736, %v829
  %v831 = vpop.f32.mrb[0].mxu0
  %832 = vmatprep.mubr.f32.mxu0 0.0
  %833 = vmatmul.mubr.f32.gmra.mrb[0].mxu0 %v743
  %v834 = vpop.f32.mrb[0].mxu0
  %v835 = vadd.f32 %v736, %v834
  %v836 = vpop.f32.mrb[0].mxu0
  %837 = vmatprep.mubr.f32.mxu0 0.0
  %838 = vmatmul.mubr.f32.gmra.mrb[0].mxu0 %v746
  %v839 = vpop.f32.mrb[0].mxu0
  %v840 = vadd.f32 %v736, %v839
  %v841 = vpop.f32.mrb[0].mxu0
  %842 = vmatprep.mubr.f32.mxu0 0.0
  %843 = vmatmul.mubr.f32.gmra.mrb[0].mxu0 %v749
  %v844 = vpop.f32.mrb[0].mxu0
  %v845 = vadd.f32 %v736, %v844
  %v846 = vpop.f32.mrb[0].mxu0
  %847 = vmatprep.mubr.f32.mxu0 0.0
  %848 = vmatmul.mubr.f32.gmra.mrb[0].mxu0 %v752
  %v849 = vpop.f32.mrb[0].mxu0
  %v850 = vadd.f32 %v736, %v849
  %v851 = vpop.f32.mrb[0].mxu0
  %852 = vmatprep.mubr.f32.mxu0 0.0
  %853 = vmatmul.mubr.f32.gmra.mrb[0].mxu0 %v755
  %v854 = vpop.f32.mrb[0].mxu0
  %v855 = vadd.f32 %v736, %v854
  %v856 = vpop.f32.mrb[0].mxu0
  %857 = vmatprep.mubr.f32.mxu0 0.0
  %858 = vmatmul.mubr.f32.gmra.mrb[0].mxu0 %v758
  %v859 = vpop.f32.mrb[0].mxu0
  %v860 = vadd.f32 %v736, %v859
  %v861 = vpop.f32.mrb[0].mxu0
  %862 = vmatprep.mubr.f32.mxu0 0.0
  %863 = vmatmul.mubr.f32.gmra.mrb[0].mxu0 %v761
  %v864 = vpop.f32.mrb[0].mxu0
  %v865 = vadd.f32 %v736, %v864
  %v866 = vpop.f32.mrb[0].mxu0
  %867 = vdwg.mxu0
  %v868 = vmax.f32 %v830, 0.0
  %v869 = vmax.f32 %v835, 0.0
  %v870 = vmax.f32 %v840, 0.0
  %v871 = vmax.f32 %v845, 0.0
  %v872 = vmax.f32 %v850, 0.0
  %v873 = vmax.f32 %v855, 0.0
  %v874 = vmax.f32 %v860, 0.0
  %v875 = vmax.f32 %v865, 0.0
  %v876 = vld [vmem:[%s9] sm:$0xff]
  %v877 = vld [vmem:[%s9 + $0x8] sm:$0xff]
  %v878 = vld [vmem:[%s9 + $0x10] sm:$0xff]
  %v879 = vld [vmem:[%s9 + $0x18] sm:$0xff]
  %v880 = vld [vmem:[%s9 + $0x20] sm:$0xff]
  %v881 = vld [vmem:[%s9 + $0x28] sm:$0xff]
  %v882 = vld [vmem:[%s9 + $0x30] sm:$0xff]
  %v883 = vld [vmem:[%s9 + $0x38] sm:$0xff]
  %v884 = vld [vmem:[%s9 + $0x40] sm:$0xff]
  %v885 = vld [vmem:[%s9 + $0x48] sm:$0xff]
  %v886 = vld [vmem:[%s9 + $0x50] sm:$0xff]
  %v887 = vld [vmem:[%s9 + $0x58] sm:$0xff]
  %v888 = vld [vmem:[%s9 + $0x60] sm:$0xff]
  %v889 = vld [vmem:[%s9 + $0x68] sm:$0xff]
  %v890 = vld [vmem:[%s9 + $0x70] sm:$0xff]
  %v891 = vld [vmem:[%s9 + $0x78] sm:$0xff]
  %v892 = vld [vmem:[%s10] sm:$0x1]
  %v894 = vlaneseq
  %v895 = vshrl.u32 %v894, 7
  %v896 = vsub.s32 0, %v895
  %v897 = vrot.slane %v892, %v896
  %899 = vmatprep.subr.mxu0 0.0
  %900 = vmatpush1.msra.mxu0 %v876
  %901 = vmatprep.subr.mxu0 0.0
  %902 = vmatpush1.msra.mxu0 %v877
  %903 = vmatprep.subr.mxu0 0.0
  %904 = vmatpush1.msra.mxu0 %v878
  %905 = vmatprep.subr.mxu0 0.0
  %906 = vmatpush1.msra.mxu0 %v879
  %907 = vmatprep.subr.mxu0 0.0
  %908 = vmatpush1.msra.mxu0 %v880
  %909 = vmatprep.subr.mxu0 0.0
  %910 = vmatpush1.msra.mxu0 %v881
  %911 = vmatprep.subr.mxu0 0.0
  %912 = vmatpush1.msra.mxu0 %v882
  %913 = vmatprep.subr.mxu0 0.0
  %914 = vmatpush1.msra.mxu0 %v883
  %915 = vmatprep.subr.mxu0 0.0
  %916 = vmatpush1.msra.mxu0 %v884
  %917 = vmatprep.subr.mxu0 0.0
  %918 = vmatpush1.msra.mxu0 %v885
  %919 = vmatprep.subr.mxu0 0.0
  %920 = vmatpush1.msra.mxu0 %v886
  %921 = vmatprep.subr.mxu0 0.0
  %922 = vmatpush1.msra.mxu0 %v887
  %923 = vmatprep.subr.mxu0 0.0
  %924 = vmatpush1.msra.mxu0 %v888
  %925 = vmatprep.subr.mxu0 0.0
  %926 = vmatpush1.msra.mxu0 %v889
  %927 = vmatprep.subr.mxu0 0.0
  %928 = vmatpush1.msra.mxu0 %v890
  %929 = vmatprep.subr.mxu0 0.0
  %930 = vmatpush1.msra.mxu0 %v891
  %931 = vmatprep.subr.mxu0 0.0
  %932 = vmatpush1.msra.mxu0 0.0
  %933 = vmatprep.subr.mxu0 0.0
  %934 = vmatpush1.msra.mxu0 0.0
  %935 = vmatprep.subr.mxu0 0.0
  %936 = vmatpush1.msra.mxu0 0.0
  %937 = vmatprep.subr.mxu0 0.0
  %938 = vmatpush1.msra.mxu0 0.0
  %939 = vmatprep.subr.mxu0 0.0
  %940 = vmatpush1.msra.mxu0 0.0
  %941 = vmatprep.subr.mxu0 0.0
  %942 = vmatpush1.msra.mxu0 0.0
  %943 = vmatprep.subr.mxu0 0.0
  %944 = vmatpush1.msra.mxu0 0.0
  %945 = vmatprep.subr.mxu0 0.0
  %946 = vmatpush1.msra.mxu0 0.0
  %947 = vmatprep.subr.mxu0 0.0
  %948 = vmatpush1.msra.mxu0 0.0
  %949 = vmatprep.subr.mxu0 0.0
  %950 = vmatpush1.msra.mxu0 0.0
  %951 = vmatprep.subr.mxu0 0.0
  %952 = vmatpush1.msra.mxu0 0.0
  %953 = vmatprep.subr.mxu0 0.0
  %954 = vmatpush1.msra.mxu0 0.0
  %955 = vmatprep.subr.mxu0 0.0
  %956 = vmatpush1.msra.mxu0 0.0
  %957 = vmatprep.subr.mxu0 0.0
  %958 = vmatpush1.msra.mxu0 0.0
  %959 = vmatprep.subr.mxu0 0.0
  %960 = vmatpush1.msra.mxu0 0.0
  %961 = vmatprep.subr.mxu0 0.0
  %962 = vmatpush1.msra.mxu0 0.0
  %963 = vmatprep.mubr.f32.mxu0 0.0
  %964 = vmatmul.mubr.f32.gmra.mrb[0].mxu0 %v868
  %v965 = vpop.f32.mrb[0].mxu0
  %v966 = vadd.f32 %v897, %v965
  %v967 = vpop.f32.mrb[0].mxu0
  %968 = vmatprep.mubr.f32.mxu0 0.0
  %969 = vmatmul.mubr.f32.gmra.mrb[0].mxu0 %v869
  %v970 = vpop.f32.mrb[0].mxu0
  %v971 = vadd.f32 %v897, %v970
  %v972 = vpop.f32.mrb[0].mxu0
  %973 = vmatprep.mubr.f32.mxu0 0.0
  %974 = vmatmul.mubr.f32.gmra.mrb[0].mxu0 %v870
  %v975 = vpop.f32.mrb[0].mxu0
  %v976 = vadd.f32 %v897, %v975
  %v977 = vpop.f32.mrb[0].mxu0
  %978 = vmatprep.mubr.f32.mxu0 0.0
  %979 = vmatmul.mubr.f32.gmra.mrb[0].mxu0 %v871
  %v980 = vpop.f32.mrb[0].mxu0
  %v981 = vadd.f32 %v897, %v980
  %v982 = vpop.f32.mrb[0].mxu0
  %983 = vmatprep.mubr.f32.mxu0 0.0
  %984 = vmatmul.mubr.f32.gmra.mrb[0].mxu0 %v872
  %v985 = vpop.f32.mrb[0].mxu0
  %v986 = vadd.f32 %v897, %v985
  %v987 = vpop.f32.mrb[0].mxu0
  %988 = vmatprep.mubr.f32.mxu0 0.0
  %989 = vmatmul.mubr.f32.gmra.mrb[0].mxu0 %v873
  %v990 = vpop.f32.mrb[0].mxu0
  %v991 = vadd.f32 %v897, %v990
  %v992 = vpop.f32.mrb[0].mxu0
  %993 = vmatprep.mubr.f32.mxu0 0.0
  %994 = vmatmul.mubr.f32.gmra.mrb[0].mxu0 %v874
  %v995 = vpop.f32.mrb[0].mxu0
  %v996 = vadd.f32 %v897, %v995
  %v997 = vpop.f32.mrb[0].mxu0
  %998 = vmatprep.mubr.f32.mxu0 0.0
  %999 = vmatmul.mubr.f32.gmra.mrb[0].mxu0 %v875
  %v1000 = vpop.f32.mrb[0].mxu0
  %v1001 = vadd.f32 %v897, %v1000
  %v1002 = vpop.f32.mrb[0].mxu0
  %1003 = vdwg.mxu0
  %vm1004 = vcmask 48128
  %1005 = vst.msk [vmem:[%s11] sm:$0xff] %vm1004, %v966
  %1006 = vst.msk [vmem:[%s11 + $0x8] sm:$0xff] %vm1004, %v971
  %1007 = vst.msk [vmem:[%s11 + $0x10] sm:$0xff] %vm1004, %v976
  %1008 = vst.msk [vmem:[%s11 + $0x18] sm:$0xff] %vm1004, %v981
  %1009 = vst.msk [vmem:[%s11 + $0x20] sm:$0xff] %vm1004, %v986
  %1010 = vst.msk [vmem:[%s11 + $0x28] sm:$0xff] %vm1004, %v991
  %1011 = vst.msk [vmem:[%s11 + $0x30] sm:$0xff] %vm1004, %v996
  %1012 = vst.msk [vmem:[%s11 + $0x38] sm:$0xff] %vm1004, %v1001
  // Predicated region
  $region46: #{tpu_custom_call.1} parent=0 // pred_check
    _
  $region47: #{tpu_custom_call.1} parent=0 // pred_check_branch
    %1014 = sbr.rel (0) target = $region49
  $region48: #{tpu_custom_call.1} parent=0 // pred_region
    _
  $region49: #{tpu_custom_call.1} parent=0 // pred_fallthru
    _
  // Predicated region
  $region50: #{tpu_custom_call.1} parent=0 // pred_check
    _
  $region51: #{tpu_custom_call.1} parent=0 // pred_check_branch
    %1016 = sbr.rel (0) target = $region53
  $region52: #{tpu_custom_call.1} parent=0 // pred_region
    _
  $region53: #{tpu_custom_call.1} parent=0 // pred_fallthru
    _

</llo_original>
